<compile_context>
chip_gen: v5e
topology: v5e:2x2
jax: 0.10.0
libtpu: 0.0.40
codegen_flags: <defaults>
</compile_context>

<pallas_src>
import functools
import math

import jax
import jax.numpy as jnp
from jax.experimental import pallas as pl
from jax.experimental.pallas import tpu as pltpu


def _spatial_op_kernel(x_ref, w_ref, b_ref, pw_ref, o_ref, *, W, C, L):
    """One row-block of SpatialOperation.

    x_ref : (Rb, Lp)   rows = (sample, channel) pairs collapsed on sublanes
                       (Rb % 8 == 0, Rb % C == 0); lanes = flattened H*W
                       spatial axis, zero-padded to a multiple of 128.
    w_ref : (9, Rb, 1) depthwise 3x3 taps per row (BN folded), k=(dy+1)*3+(dx+1)
    b_ref : (Rb, 1)    depthwise bias per row (BN folded)
    pw_ref: (Rb, 1)    1x1-conv weights per row (dim -> 1, no bias)
    o_ref : (Rb, Lp)
    """
    Rb, Lp = x_ref.shape
    G = Rb // C  # complete samples in this block

    # f32 compute (inputs are f32 here).  For bf16 activations on v6e/v7x the
    # elementwise math could stay bf16 (accumulate in f32); v5e must stay f32.
    xf = x_ref[...].astype(jnp.float32)

    # Boundary masks in *real* (W, L) coordinates.  Pad lanes (>= L) are never
    # sourced by an unmasked real lane, and their outputs are sliced away.
    lane = jax.lax.broadcasted_iota(jnp.int32, (1, Lp), 1)
    col = lane % W
    left_ok = col >= 1          # neighbour at w-1 exists (dx = -1)
    right_ok = col <= W - 2     # neighbour at w+1 exists (dx = +1)
    up_ok = lane >= W           # neighbour row h-1 exists (dy = -1)
    down_ok = lane < L - W      # neighbour row h+1 exists (dy = +1)

    def shifted(v, s):
        # y[:, p] = v[:, (p + s) % Lp]; wrapped lanes are masked by the caller.
        # XLU rotate instead of concatenate-with-zeros: no block-sized copies,
        # and the XLU slot is otherwise idle in this VPU/HBM-bound kernel.
        return v if s == 0 else pltpu.roll(v, (-s) % Lp, axis=1)

    # Three column-shifted copies of the input, shared by all dy taps.
    cols = {
        -1: jnp.where(left_ok, shifted(xf, -1), 0.0),
        0: xf,
        1: jnp.where(right_ok, shifted(xf, 1), 0.0),
    }

    wk = w_ref[...].astype(jnp.float32)       # (9, Rb, 1)
    taps = [wk[k] for k in range(9)]          # hoisted (Rb, 1) per-row taps
    bias = b_ref[...].astype(jnp.float32)     # (Rb, 1)
    pw = pw_ref[...].astype(jnp.float32)      # (Rb, 1)

    # Depthwise 3x3: combine column shifts per row offset dy, then rotate the
    # partial sum by dy*W lanes and mask rows that fall outside the image.
    acc = jnp.zeros((Rb, Lp), jnp.float32)
    for dy in (-1, 0, 1):
        inner = jnp.zeros((Rb, Lp), jnp.float32)
        for dx in (-1, 0, 1):
            k = (dy + 1) * 3 + (dx + 1)
            inner = inner + cols[dx] * taps[k]
        if dy == 0:
            acc = acc + inner
        else:
            row_ok = up_ok if dy < 0 else down_ok
            acc = acc + jnp.where(row_ok, shifted(inner, dy * W), 0.0)

    # + bias (BN folded), ReLU.
    acc = jnp.maximum(acc + bias, 0.0)

    # 1x1 conv (C -> 1) + sigmoid: exact per-sample segmented sum over each
    # group of C consecutive rows (all-f32 VPU math; sigmoid on the small
    # (1, Lp) group result before broadcasting), then one full-lane,
    # full-sublane gated store.
    gated = acc * pw
    parts = []
    for g in range(G):
        seg = gated[g * C:(g + 1) * C, :]
        att_g = jax.nn.sigmoid(jnp.sum(seg, axis=0, keepdims=True))  # (1, Lp)
        parts.append(jnp.broadcast_to(att_g, (C, Lp)))
    att = parts[0] if G == 1 else jnp.concatenate(parts, axis=0)     # (Rb, Lp)
    o_ref[...] = (xf * att).astype(o_ref.dtype)


def spatial_operation(x, dw_w, dw_b, pw_w, *,
                      block_budget_bytes=2 * 1024 * 1024,
                      vmem_limit_bytes=32 * 1024 * 1024):
    """out = x * sigmoid(Conv1x1(ReLU(DWConv3x3_BNfolded(x)))).

    x: (N, C, H, W); dw_w: (C, 3, 3); dw_b: (C,); pw_w: (C,).  BN (inference)
    must already be folded into dw_w / dw_b.
    """
    N, C, H, W = x.shape
    L = H * W
    Lp = ((L + 127) // 128) * 128   # lane-dense spatial axis (unmasked stores)
    R = N * C                       # (sample, channel) rows

    # Row-block sizing.  A "unit" is the smallest valid row block: whole
    # samples (multiple of C) and full 8-sublane vregs.
    unit = (C * 8) // math.gcd(C, 8)
    n_units = pl.cdiv(R, unit)
    # Intermediate-aware budget: ~6 block-sized f32 temporaries stay live on
    # top of the double-buffered in/out blocks, so budget the f32 working
    # block (~2 MiB => ~20 MiB total), safely under the 32 MiB VMEM limit
    # (v7x has only 64 MiB of VMEM per core).
    f32_unit_bytes = unit * Lp * 4
    max_units_budget = max(1, block_budget_bytes // f32_unit_bytes)
    # Keep >= 2 grid steps whenever possible so both v7x TensorCores get work.
    max_units_parallel = max(1, n_units // 2)
    # Bound the unrolled per-sample 1x1 reductions (compile-time guard).
    max_units_unroll = max(1, (64 * C) // unit)
    units_per_block = max(1, min(n_units, max_units_budget,
                                 max_units_parallel, max_units_unroll))
    Rb = units_per_block * unit
    grid_len = pl.cdiv(n_units, units_per_block)   # robust to awkward/prime N
    R_pad = grid_len * Rb

    # Single lane-dense copy of the input rows; zero rows/lanes pad the tail
    # (pad rows form complete channel groups and are sliced away at the end).
    x_rows = x.reshape(R, L)
    if R_pad != R or Lp != L:
        x_rows = jnp.pad(x_rows, ((0, R_pad - R), (0, Lp - L)))

    # Per-row parameters, tiled with period C.  Rb % C == 0 and blocks start
    # at multiples of Rb, so one (Rb, ...) copy is valid for every block.
    reps = Rb // C
    w9 = jnp.tile(dw_w.reshape(C, 9), (reps, 1)).T.reshape(9, Rb, 1)
    b_rows = jnp.tile(dw_b.reshape(C), reps).reshape(Rb, 1)
    pw_rows = jnp.tile(pw_w.reshape(C), reps).reshape(Rb, 1)

    # TODO(synk): for feature maps where even one (Rb, H*W) block exceeds the
    # VMEM budget, add an L-strip grid axis with a one-image-row halo (manual
    # pltpu.make_async_copy of the halo rows); unnecessary at these sizes.

    out = pl.pallas_call(
        functools.partial(_spatial_op_kernel, W=W, C=C, L=L),
        out_shape=jax.ShapeDtypeStruct((R_pad, Lp), x.dtype),
        grid=(grid_len,),
        in_specs=[
            pl.BlockSpec((Rb, Lp), lambda r: (r, 0)),
            pl.BlockSpec((9, Rb, 1), lambda r: (0, 0, 0)),
            pl.BlockSpec((Rb, 1), lambda r: (0, 0)),
            pl.BlockSpec((Rb, 1), lambda r: (0, 0)),
        ],
        out_specs=pl.BlockSpec((Rb, Lp), lambda r: (r, 0)),
        compiler_params=pltpu.CompilerParams(
            dimension_semantics=("parallel",),
            vmem_limit_bytes=vmem_limit_bytes,
        ),
    )(x_rows, w9, b_rows, pw_rows)

    return out[:R, :L].reshape(N, C, H, W)


def _reference(x, dw_w, dw_b, pw_w):
    """Pure-JAX reference with identical semantics (sanity check)."""
    N, C, H, W = x.shape
    xp = jnp.pad(x, ((0, 0), (0, 0), (1, 1), (1, 1)))
    acc = jnp.zeros((N, C, H, W), jnp.float32)
    for dy in range(3):
        for dx in range(3):
            acc = acc + xp[:, :, dy:dy + H, dx:dx + W] * dw_w[None, :, dy, dx, None, None]
    acc = acc + dw_b[None, :, None, None]
    acc = jnp.maximum(acc, 0.0)
    att = jax.nn.sigmoid(jnp.sum(acc * pw_w[None, :, None, None], axis=1, keepdims=True))
    return x * att


if __name__ == "__main__":
    key = jax.random.PRNGKey(0)
    N, C, H, W = 2, 4, 16, 16

    k_x, k_dw, k_db, k_g, k_b, k_m, k_v, k_pw = jax.random.split(key, 8)

    x = jax.random.normal(k_x, (N, C, H, W), dtype=jnp.float32)

    # Parameters matching the PyTorch module shapes.
    dw_weight = jax.random.normal(k_dw, (C, 3, 3), dtype=jnp.float32) * 0.2   # Conv2d(C,C,3,groups=C)
    dw_bias = jax.random.normal(k_db, (C,), dtype=jnp.float32) * 0.1
    bn_gamma = 1.0 + 0.1 * jax.random.normal(k_g, (C,), dtype=jnp.float32)
    bn_beta = 0.1 * jax.random.normal(k_b, (C,), dtype=jnp.float32)
    bn_mean = 0.1 * jax.random.normal(k_m, (C,), dtype=jnp.float32)
    bn_var = jnp.abs(jax.random.normal(k_v, (C,), dtype=jnp.float32)) + 0.5
    pw_weight = jax.random.normal(k_pw, (C,), dtype=jnp.float32) * 0.3        # Conv2d(C,1,1,bias=False)

    # Fold BatchNorm (inference mode) into the depthwise conv.
    eps = 1e-5
    bn_scale = bn_gamma / jnp.sqrt(bn_var + eps)
    dw_w_folded = dw_weight * bn_scale[:, None, None]
    dw_b_folded = dw_bias * bn_scale + (bn_beta - bn_mean * bn_scale)

    out = spatial_operation(x, dw_w_folded, dw_b_folded, pw_weight)
    out = jax.block_until_ready(out)

    ref = _reference(x, dw_w_folded, dw_b_folded, pw_weight)
    assert out.shape == (N, C, H, W)
    assert jnp.allclose(out, ref, atol=1e-5, rtol=1e-5), "mismatch vs reference"

    print("KERNEL_OK")
</pallas_src>

<mosaic_0001>
module attributes {stable_mosaic.version = 11 : i64} {
  func.func @_spatial_op_kernel(%arg0: i32, %arg1: memref<8x256xf32, #tpu.memory_space<vmem>>, %arg2: memref<9x8x1xf32, #tpu.memory_space<vmem>>, %arg3: memref<8x1xf32, #tpu.memory_space<vmem>>, %arg4: memref<8x1xf32, #tpu.memory_space<vmem>>, %arg5: memref<8x256xf32, #tpu.memory_space<vmem>>) attributes {dimension_semantics = [#tpu.dimension_semantics<parallel>], iteration_bounds = array<i64: 1>, scalar_prefetch = 0 : i64, scratch_operands = 0 : i64, tpu.core_type = #tpu.core_type<tc>, window_params = [{transform_indices = @transform_0, window_bounds = array<i64: 8, 256>}, {pipeline_mode = #tpu.pipeline_mode<synchronous>, transform_indices = @transform_1, window_bounds = array<i64: 9, 8, 1>}, {pipeline_mode = #tpu.pipeline_mode<synchronous>, transform_indices = @transform_2, window_bounds = array<i64: 8, 1>}, {pipeline_mode = #tpu.pipeline_mode<synchronous>, transform_indices = @transform_3, window_bounds = array<i64: 8, 1>}, {transform_indices = @transform_4, window_bounds = array<i64: 8, 256>}]} {
    %c0 = arith.constant 0 : index
    %c0_0 = arith.constant 0 : index
    %0 = vector.load %arg1[%c0, %c0_0] : memref<8x256xf32, #tpu.memory_space<vmem>>, vector<8x256xf32>
    %1 = tpu.iota {dimensions = array<i32: 1>} : vector<1x256xi32>
    %c16_i32 = arith.constant 16 : i32
    %c0_i32 = arith.constant 0 : i32
    %2 = arith.cmpi eq, %c16_i32, %c0_i32 : i32
    %c1_i32 = arith.constant 1 : i32
    %3 = arith.select %2, %c1_i32, %c16_i32 : i32
    %4 = vector.broadcast %3 : i32 to vector<1x256xi32>
    %5 = arith.remsi %1, %4 : vector<1x256xi32>
    %c0_i32_1 = arith.constant 0 : i32
    %6 = vector.broadcast %c0_i32_1 : i32 to vector<1x256xi32>
    %7 = arith.cmpi ne, %5, %6 : vector<1x256xi32>
    %c0_i32_2 = arith.constant 0 : i32
    %8 = vector.broadcast %c0_i32_2 : i32 to vector<1x256xi32>
    %9 = arith.cmpi slt, %5, %8 : vector<1x256xi32>
    %c0_i32_3 = arith.constant 0 : i32
    %10 = arith.cmpi slt, %3, %c0_i32_3 : i32
    %11 = vector.broadcast %10 : i1 to vector<1x256xi1>
    %12 = vector.broadcast %11 : vector<1x256xi1> to vector<1x256xi1>
    %13 = arith.xori %9, %12 : vector<1x256xi1>
    %14 = arith.andi %13, %7 : vector<1x256xi1>
    %15 = vector.broadcast %3 : i32 to vector<1x256xi32>
    %16 = arith.addi %5, %15 : vector<1x256xi32>
    %17 = arith.select %14, %16, %5 : vector<1x256xi1>, vector<1x256xi32>
    %c1_i32_4 = arith.constant 1 : i32
    %18 = vector.broadcast %c1_i32_4 : i32 to vector<1x256xi32>
    %19 = arith.cmpi sge, %17, %18 : vector<1x256xi32>
    %c14_i32 = arith.constant 14 : i32
    %20 = vector.broadcast %c14_i32 : i32 to vector<1x256xi32>
    %21 = arith.cmpi sle, %17, %20 : vector<1x256xi32>
    %c16_i32_5 = arith.constant 16 : i32
    %22 = vector.broadcast %c16_i32_5 : i32 to vector<1x256xi32>
    %23 = arith.cmpi sge, %1, %22 : vector<1x256xi32>
    %c240_i32 = arith.constant 240 : i32
    %24 = vector.broadcast %c240_i32 : i32 to vector<1x256xi32>
    %25 = arith.cmpi slt, %1, %24 : vector<1x256xi32>
    %c1_i32_6 = arith.constant 1 : i32
    %26 = tpu.dynamic_rotate %0 by %c1_i32_6 dim 1 : vector<8x256xf32>, i32 -> vector<8x256xf32>
    %cst = arith.constant 0.000000e+00 : f32
    %27 = vector.shape_cast %19 : vector<1x256xi1> to vector<1x256xi1>
    %28 = vector.broadcast %27 : vector<1x256xi1> to vector<8x256xi1>
    %29 = vector.broadcast %cst : f32 to vector<8x256xf32>
    %30 = arith.select %28, %26, %29 : vector<8x256xi1>, vector<8x256xf32>
    %c255_i32 = arith.constant 255 : i32
    %31 = tpu.dynamic_rotate %0 by %c255_i32 dim 1 : vector<8x256xf32>, i32 -> vector<8x256xf32>
    %cst_7 = arith.constant 0.000000e+00 : f32
    %32 = vector.shape_cast %21 : vector<1x256xi1> to vector<1x256xi1>
    %33 = vector.broadcast %32 : vector<1x256xi1> to vector<8x256xi1>
    %34 = vector.broadcast %cst_7 : f32 to vector<8x256xf32>
    %35 = arith.select %33, %31, %34 : vector<8x256xi1>, vector<8x256xf32>
    %c0_8 = arith.constant 0 : index
    %c0_9 = arith.constant 0 : index
    %c0_10 = arith.constant 0 : index
    %36 = vector.load %arg2[%c0_8, %c0_9, %c0_10] : memref<9x8x1xf32, #tpu.memory_space<vmem>>, vector<9x8x1xf32>
    %37 = vector.extract_strided_slice %36 {offsets = [0, 0, 0], sizes = [1, 8, 1], strides = [1, 1, 1]} : vector<9x8x1xf32> to vector<1x8x1xf32>
    %38 = vector.shape_cast %37 : vector<1x8x1xf32> to vector<8x1xf32>
    %39 = vector.extract_strided_slice %36 {offsets = [1, 0, 0], sizes = [1, 8, 1], strides = [1, 1, 1]} : vector<9x8x1xf32> to vector<1x8x1xf32>
    %40 = vector.shape_cast %39 : vector<1x8x1xf32> to vector<8x1xf32>
    %41 = vector.extract_strided_slice %36 {offsets = [2, 0, 0], sizes = [1, 8, 1], strides = [1, 1, 1]} : vector<9x8x1xf32> to vector<1x8x1xf32>
    %42 = vector.shape_cast %41 : vector<1x8x1xf32> to vector<8x1xf32>
    %43 = vector.extract_strided_slice %36 {offsets = [3, 0, 0], sizes = [1, 8, 1], strides = [1, 1, 1]} : vector<9x8x1xf32> to vector<1x8x1xf32>
    %44 = vector.shape_cast %43 : vector<1x8x1xf32> to vector<8x1xf32>
    %45 = vector.extract_strided_slice %36 {offsets = [4, 0, 0], sizes = [1, 8, 1], strides = [1, 1, 1]} : vector<9x8x1xf32> to vector<1x8x1xf32>
    %46 = vector.shape_cast %45 : vector<1x8x1xf32> to vector<8x1xf32>
    %47 = vector.extract_strided_slice %36 {offsets = [5, 0, 0], sizes = [1, 8, 1], strides = [1, 1, 1]} : vector<9x8x1xf32> to vector<1x8x1xf32>
    %48 = vector.shape_cast %47 : vector<1x8x1xf32> to vector<8x1xf32>
    %49 = vector.extract_strided_slice %36 {offsets = [6, 0, 0], sizes = [1, 8, 1], strides = [1, 1, 1]} : vector<9x8x1xf32> to vector<1x8x1xf32>
    %50 = vector.shape_cast %49 : vector<1x8x1xf32> to vector<8x1xf32>
    %51 = vector.extract_strided_slice %36 {offsets = [7, 0, 0], sizes = [1, 8, 1], strides = [1, 1, 1]} : vector<9x8x1xf32> to vector<1x8x1xf32>
    %52 = vector.shape_cast %51 : vector<1x8x1xf32> to vector<8x1xf32>
    %53 = vector.extract_strided_slice %36 {offsets = [8, 0, 0], sizes = [1, 8, 1], strides = [1, 1, 1]} : vector<9x8x1xf32> to vector<1x8x1xf32>
    %54 = vector.shape_cast %53 : vector<1x8x1xf32> to vector<8x1xf32>
    %c0_11 = arith.constant 0 : index
    %c0_12 = arith.constant 0 : index
    %55 = vector.load %arg3[%c0_11, %c0_12] : memref<8x1xf32, #tpu.memory_space<vmem>>, vector<8x1xf32>
    %c0_13 = arith.constant 0 : index
    %c0_14 = arith.constant 0 : index
    %56 = vector.load %arg4[%c0_13, %c0_14] : memref<8x1xf32, #tpu.memory_space<vmem>>, vector<8x1xf32>
    %cst_15 = arith.constant 0.000000e+00 : f32
    %57 = vector.broadcast %cst_15 : f32 to vector<8x256xf32>
    %cst_16 = arith.constant 0.000000e+00 : f32
    %58 = vector.broadcast %cst_16 : f32 to vector<8x256xf32>
    %59 = vector.broadcast %38 : vector<8x1xf32> to vector<8x256xf32>
    %60 = arith.mulf %30, %59 : vector<8x256xf32>
    %61 = arith.addf %58, %60 : vector<8x256xf32>
    %62 = vector.broadcast %40 : vector<8x1xf32> to vector<8x256xf32>
    %63 = arith.mulf %0, %62 : vector<8x256xf32>
    %64 = arith.addf %61, %63 : vector<8x256xf32>
    %65 = vector.broadcast %42 : vector<8x1xf32> to vector<8x256xf32>
    %66 = arith.mulf %35, %65 : vector<8x256xf32>
    %67 = arith.addf %64, %66 : vector<8x256xf32>
    %c16_i32_17 = arith.constant 16 : i32
    %68 = tpu.dynamic_rotate %67 by %c16_i32_17 dim 1 : vector<8x256xf32>, i32 -> vector<8x256xf32>
    %cst_18 = arith.constant 0.000000e+00 : f32
    %69 = vector.shape_cast %23 : vector<1x256xi1> to vector<1x256xi1>
    %70 = vector.broadcast %69 : vector<1x256xi1> to vector<8x256xi1>
    %71 = vector.broadcast %cst_18 : f32 to vector<8x256xf32>
    %72 = arith.select %70, %68, %71 : vector<8x256xi1>, vector<8x256xf32>
    %73 = arith.addf %57, %72 : vector<8x256xf32>
    %cst_19 = arith.constant 0.000000e+00 : f32
    %74 = vector.broadcast %cst_19 : f32 to vector<8x256xf32>
    %75 = vector.broadcast %44 : vector<8x1xf32> to vector<8x256xf32>
    %76 = arith.mulf %30, %75 : vector<8x256xf32>
    %77 = arith.addf %74, %76 : vector<8x256xf32>
    %78 = vector.broadcast %46 : vector<8x1xf32> to vector<8x256xf32>
    %79 = arith.mulf %0, %78 : vector<8x256xf32>
    %80 = arith.addf %77, %79 : vector<8x256xf32>
    %81 = vector.broadcast %48 : vector<8x1xf32> to vector<8x256xf32>
    %82 = arith.mulf %35, %81 : vector<8x256xf32>
    %83 = arith.addf %80, %82 : vector<8x256xf32>
    %84 = arith.addf %73, %83 : vector<8x256xf32>
    %cst_20 = arith.constant 0.000000e+00 : f32
    %85 = vector.broadcast %cst_20 : f32 to vector<8x256xf32>
    %86 = vector.broadcast %50 : vector<8x1xf32> to vector<8x256xf32>
    %87 = arith.mulf %30, %86 : vector<8x256xf32>
    %88 = arith.addf %85, %87 : vector<8x256xf32>
    %89 = vector.broadcast %52 : vector<8x1xf32> to vector<8x256xf32>
    %90 = arith.mulf %0, %89 : vector<8x256xf32>
    %91 = arith.addf %88, %90 : vector<8x256xf32>
    %92 = vector.broadcast %54 : vector<8x1xf32> to vector<8x256xf32>
    %93 = arith.mulf %35, %92 : vector<8x256xf32>
    %94 = arith.addf %91, %93 : vector<8x256xf32>
    %c240_i32_21 = arith.constant 240 : i32
    %95 = tpu.dynamic_rotate %94 by %c240_i32_21 dim 1 : vector<8x256xf32>, i32 -> vector<8x256xf32>
    %cst_22 = arith.constant 0.000000e+00 : f32
    %96 = vector.shape_cast %25 : vector<1x256xi1> to vector<1x256xi1>
    %97 = vector.broadcast %96 : vector<1x256xi1> to vector<8x256xi1>
    %98 = vector.broadcast %cst_22 : f32 to vector<8x256xf32>
    %99 = arith.select %97, %95, %98 : vector<8x256xi1>, vector<8x256xf32>
    %100 = arith.addf %84, %99 : vector<8x256xf32>
    %101 = vector.broadcast %55 : vector<8x1xf32> to vector<8x256xf32>
    %102 = arith.addf %100, %101 : vector<8x256xf32>
    %cst_23 = arith.constant 0.000000e+00 : f32
    %103 = vector.broadcast %cst_23 : f32 to vector<8x256xf32>
    %104 = arith.maximumf %102, %103 : vector<8x256xf32>
    %105 = vector.broadcast %56 : vector<8x1xf32> to vector<8x256xf32>
    %106 = arith.mulf %104, %105 : vector<8x256xf32>
    %107 = vector.extract_strided_slice %106 {offsets = [0, 0], sizes = [4, 256], strides = [1, 1]} : vector<8x256xf32> to vector<4x256xf32>
    %cst_24 = arith.constant dense<0.000000e+00> : vector<256xf32>
    %108 = vector.multi_reduction <add>, %107, %cst_24 [0] : vector<4x256xf32> to vector<256xf32>
    %109 = vector.shape_cast %108 : vector<256xf32> to vector<1x256xf32>
    %110 = arith.negf %109 : vector<1x256xf32>
    %111 = math.exp %110 : vector<1x256xf32>
    %cst_25 = arith.constant 1.000000e+00 : f32
    %112 = vector.broadcast %cst_25 : f32 to vector<1x256xf32>
    %113 = arith.addf %112, %111 : vector<1x256xf32>
    %114 = arith.divf %112, %113 : vector<1x256xf32>
    %115 = vector.shape_cast %114 : vector<1x256xf32> to vector<1x256xf32>
    %116 = vector.broadcast %115 : vector<1x256xf32> to vector<4x256xf32>
    %117 = vector.extract_strided_slice %106 {offsets = [4, 0], sizes = [4, 256], strides = [1, 1]} : vector<8x256xf32> to vector<4x256xf32>
    %cst_26 = arith.constant dense<0.000000e+00> : vector<256xf32>
    %118 = vector.multi_reduction <add>, %117, %cst_26 [0] : vector<4x256xf32> to vector<256xf32>
    %119 = vector.shape_cast %118 : vector<256xf32> to vector<1x256xf32>
    %120 = arith.negf %119 : vector<1x256xf32>
    %121 = math.exp %120 : vector<1x256xf32>
    %cst_27 = arith.constant 1.000000e+00 : f32
    %122 = vector.broadcast %cst_27 : f32 to vector<1x256xf32>
    %123 = arith.addf %122, %121 : vector<1x256xf32>
    %124 = arith.divf %122, %123 : vector<1x256xf32>
    %125 = vector.shape_cast %124 : vector<1x256xf32> to vector<1x256xf32>
    %126 = vector.broadcast %125 : vector<1x256xf32> to vector<4x256xf32>
    %127 = tpu.concatenate %116, %126 in 0 : vector<4x256xf32>, vector<4x256xf32> -> vector<8x256xf32>
    %128 = arith.mulf %0, %127 : vector<8x256xf32>
    %c0_28 = arith.constant 0 : index
    %c0_29 = arith.constant 0 : index
    %129 = vector.load %arg5[%c0_28, %c0_29] : memref<8x256xf32, #tpu.memory_space<vmem>>, vector<8x256xf32>
    tpu.vector_store %arg5[%c0_28, %c0_29], %128 {strides = array<i32>} : memref<8x256xf32, #tpu.memory_space<vmem>>, vector<8x256xf32>,
    return
  }
  func.func @transform_0(%arg0: i32) -> (i32, i32) {
    %c0_i32 = arith.constant 0 : i32
    %c0_i32_0 = arith.constant 0 : i32
    return %arg0, %c0_i32 : i32, i32
  }
  func.func @transform_1(%arg0: i32) -> (i32, i32, i32) {
    %c0_i32 = arith.constant 0 : i32
    %c0_i32_0 = arith.constant 0 : i32
    %c0_i32_1 = arith.constant 0 : i32
    %c0_i32_2 = arith.constant 0 : i32
    return %c0_i32, %c0_i32_0, %c0_i32_1 : i32, i32, i32
  }
  func.func @transform_2(%arg0: i32) -> (i32, i32) {
    %c0_i32 = arith.constant 0 : i32
    %c0_i32_0 = arith.constant 0 : i32
    %c0_i32_1 = arith.constant 0 : i32
    return %c0_i32, %c0_i32_0 : i32, i32
  }
  func.func @transform_3(%arg0: i32) -> (i32, i32) {
    %c0_i32 = arith.constant 0 : i32
    %c0_i32_0 = arith.constant 0 : i32
    %c0_i32_1 = arith.constant 0 : i32
    return %c0_i32, %c0_i32_0 : i32, i32
  }
  func.func @transform_4(%arg0: i32) -> (i32, i32) {
    %c0_i32 = arith.constant 0 : i32
    %c0_i32_0 = arith.constant 0 : i32
    return %arg0, %c0_i32 : i32, i32
  }
}

</mosaic_0001>

<llo_original>
// kernel: tpu_custom_call.1
$region0: #{tpu_custom_call.1}
  #allocation0 [shape = 'u32[]', space=smem, size = 0x4, offset = 0x4, fixed_abs, tag = 'smem constant byte address 0x4 - core index']
  #allocation1 [shape = 'u32[72,128]{1,0:T(1,128)}', space=vmem, size = 0x9000, scoped, tag = 'internal scratch']
  %s0 = inlined_call_operand.vmem [shape: f32[8,256], index: 0, kind: input, shape index: {}]
  %s1 = inlined_call_operand.vmem [shape: f32[9,8,1], index: 1, kind: input, shape index: {}]
  %s2 = inlined_call_operand.vmem [shape: f32[8,1], index: 2, kind: input, shape index: {}]
  %s3 = inlined_call_operand.vmem [shape: f32[8,1], index: 3, kind: input, shape index: {}]
  %s4 = inlined_call_operand.hbm [shape: f32[8,256], index: 4, kind: output, shape index: {}]
  %s5 = sld [smem:[#allocation0]]
  $region26: #{tpu_custom_call.1} parent=0
    _
  %s7 = ssub.s32 1, %s5
  %s8 = scalar_select 0, %s7, %s5
  $region1: #{tpu_custom_call.1} parent=0
    #allocation2 [shape = 'u8[8192]{0}', space=vmem, size = 0x2000, scoped, tag = 'output window, operand 0, single buffered']
    #allocation3 [shape = 's32[1]{0}', space=sflag, size = 0x4, scoped, tag = 'scoped memory for tpu_custom_call.1']
    %9 = vsyncpa [#allocation3], 0
    // Predicated region
    $region2: #{tpu_custom_call.1} parent=1 // pred_check
      _
    $region3: #{tpu_custom_call.1} parent=1 // pred_check_branch
      %11 = sbr.rel (0) target = $region5
    $region4: #{tpu_custom_call.1} parent=1 // pred_region
      _
    $region5: #{tpu_custom_call.1} parent=1 // pred_fallthru
      _
    // Predicated region
    $region6: #{tpu_custom_call.1} parent=1 // pred_check
      _
    $region7: #{tpu_custom_call.1} parent=1 // pred_check_branch
      %13 = sbr.rel (0) target = $region9
    $region8: #{tpu_custom_call.1} parent=1 // pred_region
      _
    $region9: #{tpu_custom_call.1} parent=1 // pred_fallthru
      _
    // Predicated region
    $region10: #{tpu_custom_call.1} parent=1 // pred_check
      _
    $region11: #{tpu_custom_call.1} parent=1 // pred_check_branch
      %15 = sbr.rel (0) target = $region13
    $region12: #{tpu_custom_call.1} parent=1 // pred_region
      _
    $region13: #{tpu_custom_call.1} parent=1 // pred_fallthru
      _
    // Predicated region
    $region14: #{tpu_custom_call.1} parent=1 // pred_check
      _
    $region15: #{tpu_custom_call.1} parent=1 // pred_check_branch
      %17 = sbr.rel (0) target = $region17
    $region16: #{tpu_custom_call.1} parent=1 // pred_region
      _
    $region17: #{tpu_custom_call.1} parent=1 // pred_fallthru
      _
    %v18 = vld [vmem:[%s0] sm:$0xff]
    %v19 = vld [vmem:[%s0 + $0x8] sm:$0xff]
    %v20 = vlaneseq
    %v21 = vand.u32 %v20, 127
    %v22 = vadd.s32 %v21, 128
    %vm23 = vcmp.lt.s32.totalorder %v21, 0
    %v24 = vsub.s32 0, %v21
    %v25 = vsel %vm23, %v24, %v21
    %v26 = vshrl.u32 %v25, 4
    %v27 = vand.u32 %v25, 15
    %v28 = vsub.s32 0, %v27
    %v29 = vsel %vm23, %v28, %v27
    %vm30 = vcmp.lt.s32.totalorder %v22, 0
    %v31 = vsub.s32 0, %v22
    %v32 = vsel %vm30, %v31, %v22
    %v33 = vshrl.u32 %v32, 4
    %v34 = vand.u32 %v32, 15
    %v35 = vsub.s32 0, %v34
    %v36 = vsel %vm30, %v35, %v34
    %vm37 = vcmp.ne.s32.totalorder %v29, 0
    %vm38 = vcmp.ne.s32.totalorder %v36, 0
    %vm39 = vcmp.lt.s32.totalorder %v29, 0
    %vm40 = vcmp.lt.s32.totalorder %v36, 0
    %vm41 = vmand %vm39, %vm37
    %vm42 = vmand %vm40, %vm38
    %v43 = vadd.s32 %v29, 16
    %v44 = vadd.s32 %v36, 16
    %v45 = vsel %vm41, %v43, %v29
    %v46 = vsel %vm42, %v44, %v36
    %vm47 = vcmp.ge.s32.totalorder %v45, 1
    %vm48 = vcmp.ge.s32.totalorder %v46, 1
    %vm49 = vcmp.le.s32.totalorder %v45, 14
    %vm50 = vcmp.le.s32.totalorder %v46, 14
    %vm51 = vcmp.ge.s32.totalorder %v21, 16
    %vm52 = vcmp.ge.s32.totalorder %v22, 16
    %vm53 = vcmp.lt.s32.totalorder %v21, 240
    %vm54 = vcmp.lt.s32.totalorder %v22, 240
    %55 = vrot.lane.b32.xlu0 %v18, 1
    %v56 = vpop.permute.xlu0 %55
    %57 = vrot.lane.b32.xlu0 %v19, 1
    %v58 = vpop.permute.xlu0 %57
    %vm59 = vcmp.lt.s32.totalorder %v21, 1
    %v60 = vsel %vm59, %v56, %v58
    %v61 = vsel %vm59, %v58, %v56
    %v62 = vsel %vm47, 1, 0
    %v63 = vsel %vm48, 1, 0
    %vm64 = vcmp.eq.s32.totalorder %v62, 1
    %vm65 = vcmp.eq.s32.totalorder %v63, 1
    %v66 = vsel %vm64, %v61, 0.0
    %v67 = vsel %vm65, %v60, 0.0
    %68 = vrot.lane.b32.xlu0 %v18, 127
    %v69 = vpop.permute.xlu0 %68
    %70 = vrot.lane.b32.xlu0 %v19, 127
    %v71 = vpop.permute.xlu0 %70
    %vm72 = vcmp.lt.s32.totalorder %v21, 127
    %v73 = vsel %vm72, %v69, %v71
    %v74 = vsel %vm72, %v71, %v69
    %v75 = vsel %vm49, 1, 0
    %v76 = vsel %vm50, 1, 0
    %vm77 = vcmp.eq.s32.totalorder %v75, 1
    %vm78 = vcmp.eq.s32.totalorder %v76, 1
    %v79 = vsel %vm77, %v73, 0.0
    %v80 = vsel %vm78, %v74, 0.0
    %v81 = vld [vmem:[%s1] sm:$0xff]
    %v82 = vld [vmem:[%s1 + $0x8] sm:$0xff]
    %v83 = vld [vmem:[%s1 + $0x10] sm:$0xff]
    %v84 = vld [vmem:[%s1 + $0x18] sm:$0xff]
    %v85 = vld [vmem:[%s1 + $0x20] sm:$0xff]
    %v86 = vld [vmem:[%s1 + $0x28] sm:$0xff]
    %v87 = vld [vmem:[%s1 + $0x30] sm:$0xff]
    %v88 = vld [vmem:[%s1 + $0x38] sm:$0xff]
    %v89 = vld [vmem:[%s1 + $0x40] sm:$0xff]
    %v90 = vld [vmem:[%s2] sm:$0xff]
    %v91 = vld [vmem:[%s3] sm:$0xff]
    %93 = vset.pattern.permute.xlu0 0
    %94 = vperm.xlu0 %93, %v81
    %v95 = vpop.permute.xlu0 %94
    %v97 = vmul.f32 %v66, %v95
    %v98 = vmul.f32 %v67, %v95
    %v99 = vadd.f32 %v97, 0.0
    %v100 = vadd.f32 %v98, 0.0
    %102 = vset.pattern.permute.xlu0 0
    %103 = vperm.xlu0 %102, %v82
    %v104 = vpop.permute.xlu0 %103
    %v106 = vmul.f32 %v18, %v104
    %v107 = vmul.f32 %v19, %v104
    %v108 = vadd.f32 %v99, %v106
    %v109 = vadd.f32 %v100, %v107
    %111 = vset.pattern.permute.xlu0 0
    %112 = vperm.xlu0 %111, %v83
    %v113 = vpop.permute.xlu0 %112
    %v115 = vmul.f32 %v79, %v113
    %v116 = vmul.f32 %v80, %v113
    %v117 = vadd.f32 %v108, %v115
    %v118 = vadd.f32 %v109, %v116
    %119 = vrot.lane.b32.xlu0 %v117, 16
    %v120 = vpop.permute.xlu0 %119
    %121 = vrot.lane.b32.xlu0 %v118, 16
    %v122 = vpop.permute.xlu0 %121
    %vm123 = vcmp.lt.s32.totalorder %v21, 16
    %v124 = vsel %vm123, %v120, %v122
    %v125 = vsel %vm123, %v122, %v120
    %v126 = vsel %vm51, 1, 0
    %v127 = vsel %vm52, 1, 0
    %vm128 = vcmp.eq.s32.totalorder %v126, 1
    %vm129 = vcmp.eq.s32.totalorder %v127, 1
    %v130 = vsel %vm128, %v125, 0.0
    %v131 = vsel %vm129, %v124, 0.0
    %v132 = vadd.f32 %v130, 0.0
    %v133 = vadd.f32 %v131, 0.0
    %135 = vset.pattern.permute.xlu0 0
    %136 = vperm.xlu0 %135, %v84
    %v137 = vpop.permute.xlu0 %136
    %v139 = vmul.f32 %v66, %v137
    %v140 = vmul.f32 %v67, %v137
    %v141 = vadd.f32 %v139, 0.0
    %v142 = vadd.f32 %v140, 0.0
    %144 = vset.pattern.permute.xlu0 0
    %145 = vperm.xlu0 %144, %v85
    %v146 = vpop.permute.xlu0 %145
    %v148 = vmul.f32 %v18, %v146
    %v149 = vmul.f32 %v19, %v146
    %v150 = vadd.f32 %v141, %v148
    %v151 = vadd.f32 %v142, %v149
    %153 = vset.pattern.permute.xlu0 0
    %154 = vperm.xlu0 %153, %v86
    %v155 = vpop.permute.xlu0 %154
    %v157 = vmul.f32 %v79, %v155
    %v158 = vmul.f32 %v80, %v155
    %v159 = vadd.f32 %v150, %v157
    %v160 = vadd.f32 %v151, %v158
    %v161 = vadd.f32 %v132, %v159
    %v162 = vadd.f32 %v133, %v160
    %164 = vset.pattern.permute.xlu0 0
    %165 = vperm.xlu0 %164, %v87
    %v166 = vpop.permute.xlu0 %165
    %v168 = vmul.f32 %v66, %v166
    %v169 = vmul.f32 %v67, %v166
    %v170 = vadd.f32 %v168, 0.0
    %v171 = vadd.f32 %v169, 0.0
    %173 = vset.pattern.permute.xlu0 0
    %174 = vperm.xlu0 %173, %v88
    %v175 = vpop.permute.xlu0 %174
    %v177 = vmul.f32 %v18, %v175
    %v178 = vmul.f32 %v19, %v175
    %v179 = vadd.f32 %v170, %v177
    %v180 = vadd.f32 %v171, %v178
    %182 = vset.pattern.permute.xlu0 0
    %183 = vperm.xlu0 %182, %v89
    %v184 = vpop.permute.xlu0 %183
    %v186 = vmul.f32 %v79, %v184
    %v187 = vmul.f32 %v80, %v184
    %v188 = vadd.f32 %v179, %v186
    %v189 = vadd.f32 %v180, %v187
    %190 = vrot.lane.b32.xlu0 %v188, 112
    %v191 = vpop.permute.xlu0 %190
    %192 = vrot.lane.b32.xlu0 %v189, 112
    %v193 = vpop.permute.xlu0 %192
    %vm194 = vcmp.lt.s32.totalorder %v21, 112
    %v195 = vsel %vm194, %v191, %v193
    %v196 = vsel %vm194, %v193, %v191
    %v197 = vsel %vm53, 1, 0
    %v198 = vsel %vm54, 1, 0
    %vm199 = vcmp.eq.s32.totalorder %v197, 1
    %vm200 = vcmp.eq.s32.totalorder %v198, 1
    %v201 = vsel %vm199, %v195, 0.0
    %v202 = vsel %vm200, %v196, 0.0
    %v203 = vadd.f32 %v161, %v201
    %v204 = vadd.f32 %v162, %v202
    %206 = vset.pattern.permute.xlu0 0
    %207 = vperm.xlu0 %206, %v90
    %v208 = vpop.permute.xlu0 %207
    %v210 = vadd.f32 %v203, %v208
    %v211 = vadd.f32 %v204, %v208
    %v212 = vmax.f32 %v210, 0.0
    %v213 = vmax.f32 %v211, 0.0
    %215 = vset.pattern.permute.xlu0 0
    %216 = vperm.xlu0 %215, %v91
    %v217 = vpop.permute.xlu0 %216
    %v219 = vmul.f32 %v212, %v217
    %v220 = vmul.f32 %v213, %v217
    %vm221 = vcmask 1043456
    %v222 = vsel %vm221, %v219, 0.0
    %v223 = vrot.slane %v222, 4
    %v224 = vadd.f32 %v222, %v223
    %v225 = vrot.slane %v224, 2
    %v226 = vadd.f32 %v224, %v225
    %v227 = vrot.slane %v226, 1
    %v228 = vadd.f32 %v226, %v227
    %v229 = vsel %vm221, %v220, 0.0
    %v230 = vrot.slane %v229, 4
    %v231 = vadd.f32 %v229, %v230
    %v232 = vrot.slane %v231, 2
    %v233 = vadd.f32 %v231, %v232
    %v234 = vrot.slane %v233, 1
    %v235 = vadd.f32 %v233, %v234
    %v236 = vxor.u32 %v228, 2147483648
    %v237 = vxor.u32 %v235, 2147483648
    %v238 = vmul.f32 %v236, 1.442695
    %v239 = vpow.pop %v238
    %v240 = vmul.f32 %v237, 1.442695
    %v241 = vpow.pop %v240
    %v242 = vadd.f32 %v239, 1.0
    %v243 = vadd.f32 %v241, 1.0
    %v244 = vrcp.pop %v242
    %v245 = vmul.f32 %v242, %v244
    %v246 = vsub.f32 1.0, %v245
    %v247 = vmul.f32 %v244, %v246
    %v248 = vadd.f32 %v244, %v247
    %vm249 = vweird.f32 %v242
    %vm250 = vweird.f32 %v244
    %vm251 = vmor %vm249, %vm250
    %v252 = vsel %vm251, %v244, %v248
    %v253 = vand.u32 2147483647, %v242
    %vm254 = vcmp.eq.f32.partialorder %v253, 8.507059e+37
    %v255 = vand.u32 %v242, 2147483648
    %v256 = vor.u32 1.1754944e-38, %v255
    %v257 = vsel %vm254, %v256, %v252
    %v258 = vmul.f32 1.0, %v257
    %v259 = vrcp.pop %v243
    %v260 = vmul.f32 %v243, %v259
    %v261 = vsub.f32 1.0, %v260
    %v262 = vmul.f32 %v259, %v261
    %v263 = vadd.f32 %v259, %v262
    %vm264 = vweird.f32 %v243
    %vm265 = vweird.f32 %v259
    %vm266 = vmor %vm264, %vm265
    %v267 = vsel %vm266, %v259, %v263
    %v268 = vand.u32 2147483647, %v243
    %vm269 = vcmp.eq.f32.partialorder %v268, 8.507059e+37
    %v270 = vand.u32 %v243, 2147483648
    %v271 = vor.u32 1.1754944e-38, %v270
    %v272 = vsel %vm269, %v271, %v267
    %v273 = vmul.f32 1.0, %v272
    %v276 = vrot.slane %v219, 4
    %v277 = vrot.slane %v220, 4
    %v280 = vsel %vm221, %v276, 0.0
    %v281 = vrot.slane %v280, 4
    %v282 = vadd.f32 %v280, %v281
    %v283 = vrot.slane %v282, 2
    %v284 = vadd.f32 %v282, %v283
    %v285 = vrot.slane %v284, 1
    %v286 = vadd.f32 %v284, %v285
    %v287 = vsel %vm221, %v277, 0.0
    %v288 = vrot.slane %v287, 4
    %v289 = vadd.f32 %v287, %v288
    %v290 = vrot.slane %v289, 2
    %v291 = vadd.f32 %v289, %v290
    %v292 = vrot.slane %v291, 1
    %v293 = vadd.f32 %v291, %v292
    %v294 = vxor.u32 %v286, 2147483648
    %v295 = vxor.u32 %v293, 2147483648
    %v296 = vmul.f32 %v294, 1.442695
    %v297 = vpow.pop %v296
    %v298 = vmul.f32 %v295, 1.442695
    %v299 = vpow.pop %v298
    %v300 = vadd.f32 %v297, 1.0
    %v301 = vadd.f32 %v299, 1.0
    %v302 = vrcp.pop %v300
    %v303 = vmul.f32 %v300, %v302
    %v304 = vsub.f32 1.0, %v303
    %v305 = vmul.f32 %v302, %v304
    %v306 = vadd.f32 %v302, %v305
    %vm307 = vweird.f32 %v300
    %vm308 = vweird.f32 %v302
    %vm309 = vmor %vm307, %vm308
    %v310 = vsel %vm309, %v302, %v306
    %v311 = vand.u32 2147483647, %v300
    %vm312 = vcmp.eq.f32.partialorder %v311, 8.507059e+37
    %v313 = vand.u32 %v300, 2147483648
    %v314 = vor.u32 1.1754944e-38, %v313
    %v315 = vsel %vm312, %v314, %v310
    %v316 = vmul.f32 1.0, %v315
    %v317 = vrcp.pop %v301
    %v318 = vmul.f32 %v301, %v317
    %v319 = vsub.f32 1.0, %v318
    %v320 = vmul.f32 %v317, %v319
    %v321 = vadd.f32 %v317, %v320
    %vm322 = vweird.f32 %v301
    %vm323 = vweird.f32 %v317
    %vm324 = vmor %vm322, %vm323
    %v325 = vsel %vm324, %v317, %v321
    %v326 = vand.u32 2147483647, %v301
    %vm327 = vcmp.eq.f32.partialorder %v326, 8.507059e+37
    %v328 = vand.u32 %v301, 2147483648
    %v329 = vor.u32 1.1754944e-38, %v328
    %v330 = vsel %vm327, %v329, %v325
    %v331 = vmul.f32 1.0, %v330
    %v332 = vsel %vm221, %v258, %v316
    %v333 = vsel %vm221, %v273, %v331
    %v334 = vmul.f32 %v18, %v332
    %v335 = vmul.f32 %v19, %v333
    %336 = vst [vmem:[#allocation2] sm:$0xff] %v334
    %337 = vst [vmem:[#allocation2 + $0x8] sm:$0xff] %v335
    // Predicated region
    $region18: #{tpu_custom_call.1} parent=1 // pred_check
      _
    $region19: #{tpu_custom_call.1} parent=1 // pred_check_branch
      %339 = sbr.rel (0) target = $region21
    $region20: #{tpu_custom_call.1} parent=1 // pred_region
      %341 = vsyncadd [#allocation3], 0
      %s343 = sshll.u32 [#allocation2], 4
      %s344 = int_to_ptr.vmem [resolvable:$true] %s343
      %s345 = sshll.u32 %s4, 4
      %s346 = int_to_ptr.hbm [resolvable:$true] %s345
      %348 = dma.vmem_to_hbm [thread:$0]  %s344, 256, %s346, [#allocation3]
    $region21: #{tpu_custom_call.1} parent=1 // pred_fallthru
      _
    // Predicated region
    $region22: #{tpu_custom_call.1} parent=1 // pred_check
      _
    $region23: #{tpu_custom_call.1} parent=1 // pred_check_branch
      %350 = sbr.rel (0) target = $region25
    $region24: #{tpu_custom_call.1} parent=1 // pred_region
      %352 = dma.done [#allocation3], 256
    $region25: #{tpu_custom_call.1} parent=1 // pred_fallthru
      _
    %353 = vsyncpa [#allocation3], 1

</llo_original>
